<compile_context>
chip_gen: v7x
topology: tpu7x:2x2x1
jax: 0.10.0
libtpu: 0.0.40
codegen_flags: <defaults>
</compile_context>

<pallas_src>
import math

import jax
import jax.numpy as jnp
import numpy as np
from jax import lax
from jax.experimental import pallas as pl
from jax.experimental.pallas import tpu as pltpu


def _round_up(x, m):
    return (x + m - 1) // m * m


def get_embedding(num_embeddings, embedding_dim, padding_idx=0):
    """Reference sinusoidal table (tensor2tensor variant), mirrors
    SinusoidalPositionalEmbedding.get_embedding exactly.  Used only for the
    self-test; the kernel computes identical values directly.
    NOTE: embedding_dim == 2 divides by zero (half_dim - 1 == 0), same as the
    PyTorch reference."""
    half_dim = embedding_dim // 2
    scale = math.log(10000.0) / (half_dim - 1)
    freqs = jnp.exp(jnp.arange(half_dim, dtype=jnp.float32) * -scale)
    args = jnp.arange(num_embeddings, dtype=jnp.float32)[:, None] * freqs[None, :]
    emb = jnp.concatenate([jnp.sin(args), jnp.cos(args)], axis=1).reshape(num_embeddings, -1)
    if embedding_dim % 2 == 1:
        emb = jnp.concatenate([emb, jnp.zeros((num_embeddings, 1), jnp.float32)], axis=1)
    if padding_idx is not None:
        emb = emb.at[padding_idx, :].set(0.0)
    return emb


def _make_sincos_kernel(padding_idx, half_dim, out_dim):
    """Kernel: out[tile_n, out_dim] = sinusoidal_embedding(pos[tile_n])."""
    two_half = 2 * half_dim

    def kernel(pos_ref, freq_ref, o_ref):
        # pos_ref : (TILE_N, 1)      int32  positions for this output tile
        # freq_ref: (1, out_dim)     f32    [freqs | freqs | (zero col if odd dim)]
        # o_ref   : (TILE_N, out_dim) f32   output tile
        pos_i = pos_ref[...]                                        # (TILE_N, 1)
        args = pos_i.astype(jnp.float32) * freq_ref[...]            # (TILE_N, out_dim)
        col = lax.broadcasted_iota(jnp.int32, args.shape, 1)
        # sin half vs cos half selected per lane.  Computing both and selecting
        # keeps every vector op full-tile aligned (no unaligned lane concat and
        # no masked sub-vreg stores); the extra EUP work hides under the store.
        emb = jnp.where(col < half_dim, jnp.sin(args), jnp.cos(args))
        if out_dim > two_half:                                      # odd embedding_dim: zero pad col
            emb = jnp.where(col < two_half, emb, 0.0)
        # Rows whose position equals padding_idx are zero (zeroed table row).
        o_ref[...] = jnp.where(pos_i != padding_idx, emb, 0.0)

    return kernel


def sinusoidal_embed(positions_flat, freq_full, *, half_dim, padding_idx, tile_n=512):
    """out[i, :] = sinusoidal embedding of positions_flat[i] (padding_idx row -> 0)."""
    n = positions_flat.shape[0]
    out_dim = freq_full.shape[-1]

    if n >= tile_n:
        tn = tile_n                          # large inputs: 512-row tiles, "parallel" grid
        n_pad = _round_up(n, tn)
    else:
        n_pad = _round_up(max(n, 1), 8)      # tiny inputs: one whole tile (sublane-quantized)
        tn = n_pad

    pos = positions_flat.astype(jnp.int32).reshape(n, 1)
    if n_pad != n:
        # Pad rows get padding_idx -> zero rows, sliced off afterwards.
        pad = jnp.full((n_pad, 1), padding_idx, jnp.int32)
        pos = lax.dynamic_update_slice(pad, pos, (0, 0))

    out = pl.pallas_call(
        _make_sincos_kernel(padding_idx, half_dim, out_dim),
        out_shape=jax.ShapeDtypeStruct((n_pad, out_dim), jnp.float32),
        grid_spec=pltpu.PrefetchScalarGridSpec(
            num_scalar_prefetch=0,
            grid=(n_pad // tn,),
            in_specs=[
                pl.BlockSpec((tn, 1), lambda i: (i, 0)),        # positions tile
                pl.BlockSpec((1, out_dim), lambda i: (0, 0)),   # tiny freq row, constant block
            ],
            out_specs=pl.BlockSpec((tn, out_dim), lambda i: (i, 0)),
        ),
        compiler_params=pltpu.CompilerParams(dimension_semantics=("parallel",)),
    )(pos, freq_full)
    return out[:n] if n_pad != n else out


class SinusoidalPositionalEmbedding:
    def __init__(self, embedding_dim, padding_idx=0, init_size=1024):
        self.embedding_dim = embedding_dim
        self.padding_idx = padding_idx
        self.init_size = init_size  # kept for API parity; no table needs storing/regrowing
        half_dim = embedding_dim // 2
        self.half_dim = half_dim
        # Same as reference (divides by zero for embedding_dim == 2, as in PyTorch).
        scale = math.log(10000.0) / (half_dim - 1)
        freqs = jnp.exp(jnp.arange(half_dim, dtype=jnp.float32) * -scale)
        # Hoisted out of forward (perf review): duplicated freqs for the sin and
        # cos halves, plus a zero column when embedding_dim is odd.
        parts = [freqs, freqs]
        if embedding_dim % 2 == 1:
            parts.append(jnp.zeros((1,), jnp.float32))
        self.freq_full = jnp.concatenate(parts).reshape(1, embedding_dim)

    def __call__(self, inp):
        """inp: [bsz, seq_len] int tokens -> [bsz, seq_len, embedding_dim] float32."""
        bsz, seq_len = inp.shape
        # NOTE: cumsum is along dim=0 (batch), exactly as written in the reference.
        mask = (inp != self.padding_idx).astype(jnp.int32)
        positions = jnp.cumsum(mask, axis=0) * mask + self.padding_idx
        # Direct in-kernel sin/cos == indexing an arbitrarily large sinusoidal
        # table, so no table growth / OOB handling is needed on the host.
        out = sinusoidal_embed(
            positions.reshape(-1), self.freq_full,
            half_dim=self.half_dim, padding_idx=self.padding_idx)
        return out.reshape(bsz, seq_len, self.embedding_dim)


if __name__ == "__main__":
    bsz, seq_len, embedding_dim = 2, 8, 32
    key = jax.random.PRNGKey(0)
    # Some tokens equal padding_idx=0 so the padding path is exercised.
    tokens = jax.random.randint(key, (bsz, seq_len), 0, 6, dtype=jnp.int32)

    mod = SinusoidalPositionalEmbedding(embedding_dim, padding_idx=0, init_size=1024)
    out = jax.block_until_ready(mod(tokens))

    # Pure-JAX reference check: same positions, indexed into the reference table.
    mask = (tokens != 0).astype(jnp.int32)
    positions = jnp.cumsum(mask, axis=0) * mask + 0
    table = get_embedding(1024, embedding_dim, padding_idx=0)
    ref = table[positions.reshape(-1)].reshape(bsz, seq_len, embedding_dim)

    assert out.shape == (bsz, seq_len, embedding_dim) and out.dtype == jnp.float32
    # Kernel computes the same f32 args and real sin/cos; allow a few ulps of
    # difference between the Pallas and XLA transcendental implementations.
    np.testing.assert_allclose(np.asarray(out), np.asarray(ref), rtol=0, atol=1e-5)
    print("KERNEL_OK")
</pallas_src>

<mosaic_0001>
module attributes {stable_mosaic.version = 11 : i64} {
  func.func @kernel(%arg0: i32, %arg1: memref<16x1xi32, #tpu.memory_space<vmem>>, %arg2: memref<1x32xf32, #tpu.memory_space<vmem>>, %arg3: memref<16x32xf32, #tpu.memory_space<vmem>>) attributes {dimension_semantics = [#tpu.dimension_semantics<parallel>], iteration_bounds = array<i64: 1>, scalar_prefetch = 0 : i64, scratch_operands = 0 : i64, tpu.core_type = #tpu.core_type<tc>, window_params = [{transform_indices = @transform_0, window_bounds = array<i64: 16, 1>}, {pipeline_mode = #tpu.pipeline_mode<synchronous>, transform_indices = @transform_1, window_bounds = array<i64: 1, 32>}, {transform_indices = @transform_2, window_bounds = array<i64: 16, 32>}]} {
    %c0 = arith.constant 0 : index
    %c0_0 = arith.constant 0 : index
    %0 = vector.load %arg1[%c0, %c0_0] : memref<16x1xi32, #tpu.memory_space<vmem>>, vector<16x1xi32>
    %1 = arith.sitofp %0 : vector<16x1xi32> to vector<16x1xf32>
    %c0_1 = arith.constant 0 : index
    %c0_2 = arith.constant 0 : index
    %2 = vector.load %arg2[%c0_1, %c0_2] : memref<1x32xf32, #tpu.memory_space<vmem>>, vector<1x32xf32>
    %3 = vector.broadcast %1 : vector<16x1xf32> to vector<16x32xf32>
    %4 = vector.broadcast %2 : vector<1x32xf32> to vector<16x32xf32>
    %5 = arith.mulf %3, %4 : vector<16x32xf32>
    %6 = tpu.iota {dimensions = array<i32: 1>} : vector<16x32xi32>
    %c16_i32 = arith.constant 16 : i32
    %7 = vector.broadcast %c16_i32 : i32 to vector<16x32xi32>
    %8 = arith.cmpi slt, %6, %7 : vector<16x32xi32>
    %9 = math.sin %5 : vector<16x32xf32>
    %10 = math.cos %5 : vector<16x32xf32>
    %11 = arith.select %8, %9, %10 : vector<16x32xi1>, vector<16x32xf32>
    %c0_i32 = arith.constant 0 : i32
    %12 = vector.broadcast %c0_i32 : i32 to vector<16x1xi32>
    %13 = arith.cmpi ne, %0, %12 : vector<16x1xi32>
    %cst = arith.constant 0.000000e+00 : f32
    %14 = vector.shape_cast %13 : vector<16x1xi1> to vector<16x1xi1>
    %15 = vector.broadcast %14 : vector<16x1xi1> to vector<16x32xi1>
    %16 = vector.broadcast %cst : f32 to vector<16x32xf32>
    %17 = arith.select %15, %11, %16 : vector<16x32xi1>, vector<16x32xf32>
    %c0_3 = arith.constant 0 : index
    %c0_4 = arith.constant 0 : index
    %18 = vector.load %arg3[%c0_3, %c0_4] : memref<16x32xf32, #tpu.memory_space<vmem>>, vector<16x32xf32>
    tpu.vector_store %arg3[%c0_3, %c0_4], %17 {strides = array<i32>} : memref<16x32xf32, #tpu.memory_space<vmem>>, vector<16x32xf32>,
    return
  }
  func.func @transform_0(%arg0: i32) -> (i32, i32) {
    %c0_i32 = arith.constant 0 : i32
    %c0_i32_0 = arith.constant 0 : i32
    return %arg0, %c0_i32 : i32, i32
  }
  func.func @transform_1(%arg0: i32) -> (i32, i32) {
    %c0_i32 = arith.constant 0 : i32
    %c0_i32_0 = arith.constant 0 : i32
    %c0_i32_1 = arith.constant 0 : i32
    return %c0_i32, %c0_i32_0 : i32, i32
  }
  func.func @transform_2(%arg0: i32) -> (i32, i32) {
    %c0_i32 = arith.constant 0 : i32
    %c0_i32_0 = arith.constant 0 : i32
    return %arg0, %c0_i32 : i32, i32
  }
}

</mosaic_0001>

<llo_original>
// kernel: tpu_custom_call.1
$region0: #{tpu_custom_call.1}
  #allocation0 [shape = 'u32[]', space=smem, size = 0x4, offset = 0x4, fixed_abs, tag = 'smem constant byte address 0x4 - core index']
  #allocation1 [shape = 'u32[144,128]{1,0:T(1,128)}', space=vmem, size = 0x12000, scoped, tag = 'internal scratch']
  %s0 = inlined_call_operand.vmem [shape: s32[16,1], index: 0, kind: input, shape index: {}]
  %s1 = inlined_call_operand.vmem [shape: f32[1,32], index: 1, kind: input, shape index: {}]
  %s2 = inlined_call_operand.hbm [shape: f32[16,32], index: 2, kind: output, shape index: {}]
  %s3 = sld [smem:[#allocation0]]
  $region18: #{tpu_custom_call.1} parent=0
    _
  %s5 = ssub.s32 1, %s3
  %s6 = scalar_select 0, %s5, %s3
  $region1: #{tpu_custom_call.1} parent=0
    #allocation2 [shape = 'u8[8192]{0}', space=vmem, size = 0x2000, scoped, tag = 'output window, operand 0, single buffered']
    #allocation3 [shape = 's32[1]{0}', space=sflag, size = 0x4, scoped, tag = 'scoped memory for tpu_custom_call.1']
    %7 = vsyncpa [#allocation3], 0
    // Predicated region
    $region2: #{tpu_custom_call.1} parent=1 // pred_check
      _
    $region3: #{tpu_custom_call.1} parent=1 // pred_check_branch
      %9 = sbr.rel (0) target = $region5
    $region4: #{tpu_custom_call.1} parent=1 // pred_region
      _
    $region5: #{tpu_custom_call.1} parent=1 // pred_fallthru
      _
    // Predicated region
    $region6: #{tpu_custom_call.1} parent=1 // pred_check
      _
    $region7: #{tpu_custom_call.1} parent=1 // pred_check_branch
      %11 = sbr.rel (0) target = $region9
    $region8: #{tpu_custom_call.1} parent=1 // pred_region
      _
    $region9: #{tpu_custom_call.1} parent=1 // pred_fallthru
      _
    %v12 = vld [vmem:[%s0] sm:$0xff]
    %v13 = vld [vmem:[%s0 + $0x8] sm:$0xff]
    %v14 = vcvt.s32.f32 %v12
    %v15 = vcvt.s32.f32 %v13
    %v16 = vld [vmem:[%s1] sm:$0x1]
    %18 = vset.pattern.permute.xlu0 0
    %19 = vperm.xlu0 %18, %v14
    %v20 = vpop.permute.xlu0 %19
    %23 = vset.pattern.permute.xlu0 0
    %24 = vperm.xlu0 %23, %v15
    %v25 = vpop.permute.xlu0 %24
    %v28 = vlaneseq
    %v29 = vshrl.u32 %v28, 7
    %v30 = vsub.s32 0, %v29
    %v31 = vrot.slane %v16, %v30
    %v33 = vmul.f32 %v20, %v31
    %v34 = vmul.f32 %v25, %v31
    %v35 = vlaneseq
    %v36 = vand.u32 %v35, 127
    %vm37 = vcmp.lt.s32.totalorder %v36, 16
    %v38 = vand.u32 2147483647, %v33
    %vm39 = vcmp.le.f32.partialorder %v38, 0.7853982
    %vm40 = vcmp.lt.s32.totalorder %v33, 0
    %v41 = vand.u32 %v33, 2139095040
    %v42 = vshrl.u32 %v41, 23
    %v43 = vsub.s32 %v42, 127
    %v44 = vand.u32 2147483647, %v33
    %v45 = vand.u32 %v44, 8388607
    %v46 = vor.u32 %v45, 8388608
    %v47 = vsub.s32 0, %v46
    %v48 = vadd.s32 %v43, 1
    %vm49 = vcmp.gt.s32.totalorder %v48, 0
    %v50 = vsel %vm49, %v48, 0
    %v51 = vshrl.u32 %v50, 5
    %v52 = vand.u32 %v50, 31
    %v53 = vsub.s32 32, %v52
    %v54 = vshrl.u32 683565275, %v53
    %v55 = vshll.u32 683565275, %v52
    %v56 = vshrl.u32 2475754826, %v53
    %v57 = vor.u32 %v55, %v56
    %v58 = vshll.u32 2475754826, %v52
    %v59 = vshrl.u32 2131351028, %v53
    %v60 = vor.u32 %v58, %v59
    %v61 = vshll.u32 2131351028, %v52
    %v62 = vshrl.u32 2102212464, %v53
    %v63 = vor.u32 %v61, %v62
    %v64 = vshll.u32 2102212464, %v52
    %v65 = vshrl.u32 920167782, %v53
    %v66 = vor.u32 %v64, %v65
    %v67 = vshll.u32 920167782, %v52
    %v68 = vshrl.u32 1326507024, %v53
    %v69 = vor.u32 %v67, %v68
    %vm70 = vcmp.lt.s32.totalorder %v51, 1
    %vm71 = vcmp.lt.s32.totalorder %v51, 2
    %vm72 = vcmp.lt.s32.totalorder %v51, 3
    %vm73 = vcmp.lt.s32.totalorder %v51, 4
    %v74 = vsel %vm70, %v54, %v57
    %v75 = vsel %vm73, %v63, 2102212464
    %v76 = vsel %vm72, %v60, %v75
    %v77 = vsel %vm71, %v74, %v76
    %v78 = vsel %vm70, %v57, %v60
    %v79 = vsel %vm73, %v66, 920167782
    %v80 = vsel %vm72, %v63, %v79
    %v81 = vsel %vm71, %v78, %v80
    %v82 = vsel %vm70, %v60, %v63
    %v83 = vsel %vm73, %v69, 1326507024
    %v84 = vsel %vm72, %v66, %v83
    %v85 = vsel %vm71, %v82, %v84
    %v86 = vshll.u32 %v46, 8
    %v87 = vmul.u32.u64.compose %v86, %v85
    %v88 = vextract.low.u32 %v87
    %v89 = vextract.high.u32 %v87
    %v90 = vmul.u32.u64.compose %v86, %v81
    %v91 = vextract.low.u32 %v90
    %v92 = vextract.high.u32 %v90
    %v93 = vmul.u32 %v86, %v77
    %v94 = vadd.s32 %v89, %v91
    %vm95 = vc.u32 %v89, %v91
    %v96 = vadd.s32 %v92, 1
    %v97 = vsel %vm95, %v96, %v92
    %v98 = vadd.s32 %v93, %v97
    %v99 = vadd.s32 %v98, 536870912
    %v100 = vshrl.u32 %v99, 30
    %v101 = vshll.u32 %v100, 30
    %v102 = vsub.s32 %v98, %v101
    %vm103 = vcmp.lt.s32.totalorder %v102, 0
    %v104 = vsub.s32 0, %v102
    %v105 = vsel %vm103, %v104, %v102
    %v106 = vclz %v105
    %v107 = vsub.s32 %v106, 2
    %vm108 = vcmp.gt.s32.totalorder 0, %v107
    %v109 = vsel %vm108, 0, %v107
    %v110 = vsub.s32 32, %v109
    %v111 = vshll.u32 %v102, %v109
    %v112 = vshrl.u32 %v94, %v110
    %v113 = vor.u32 %v111, %v112
    %v114 = vsub.s32 4294967266, %v109
    %v115 = vadd.s32 %v114, 127
    %v116 = vshll.u32 %v115, 23
    %v117 = vor.u32 4788187, %v116
    %v118 = vand.u32 2147483647, %v117
    %v120 = vcvt.s32.f32 %v113
    %v121 = vmul.f32 %v120, %v118
    %v122 = vxor.u32 %v121, 2147483648
    %v123 = vsel %vm40, %v122, %v121
    %v124 = vsub.s32 4, %v100
    %v125 = vsel %vm40, %v124, %v100
    %v126 = vsel %vm39, %v33, %v123
    %v127 = vsel %vm39, 0, %v125
    %v128 = vcosq.f32.pop %v126
    %v129 = vsinq.f32.pop %v126
    %vm130 = vweird.f32 %v33
    %v131 = vadd.s32 %v127, 3
    %v132 = vand.u32 %v131, 3
    %vm133 = vcmp.lt.s32.totalorder %v132, 2
    %vm134 = vcmp.eq.s32.totalorder %v132, 0
    %v135 = vxor.u32 %v129, 2147483648
    %v136 = vsel %vm134, %v128, %v135
    %vm137 = vcmp.eq.s32.totalorder %v132, 2
    %v138 = vxor.u32 %v128, 2147483648
    %v139 = vsel %vm137, %v138, %v129
    %v140 = vsel %vm133, %v136, %v139
    %v141 = vsel %vm130, nan, %v140
    %v142 = vand.u32 2147483647, %v34
    %vm143 = vcmp.le.f32.partialorder %v142, 0.7853982
    %vm144 = vcmp.lt.s32.totalorder %v34, 0
    %v145 = vand.u32 %v34, 2139095040
    %v146 = vshrl.u32 %v145, 23
    %v147 = vsub.s32 %v146, 127
    %v148 = vand.u32 2147483647, %v34
    %v149 = vand.u32 %v148, 8388607
    %v150 = vor.u32 %v149, 8388608
    %v151 = vsub.s32 0, %v150
    %v152 = vadd.s32 %v147, 1
    %vm153 = vcmp.gt.s32.totalorder %v152, 0
    %v154 = vsel %vm153, %v152, 0
    %v155 = vshrl.u32 %v154, 5
    %v156 = vand.u32 %v154, 31
    %v157 = vsub.s32 32, %v156
    %v158 = vshrl.u32 683565275, %v157
    %v159 = vshll.u32 683565275, %v156
    %v160 = vshrl.u32 2475754826, %v157
    %v161 = vor.u32 %v159, %v160
    %v162 = vshll.u32 2475754826, %v156
    %v163 = vshrl.u32 2131351028, %v157
    %v164 = vor.u32 %v162, %v163
    %v165 = vshll.u32 2131351028, %v156
    %v166 = vshrl.u32 2102212464, %v157
    %v167 = vor.u32 %v165, %v166
    %v168 = vshll.u32 2102212464, %v156
    %v169 = vshrl.u32 920167782, %v157
    %v170 = vor.u32 %v168, %v169
    %v171 = vshll.u32 920167782, %v156
    %v172 = vshrl.u32 1326507024, %v157
    %v173 = vor.u32 %v171, %v172
    %vm174 = vcmp.lt.s32.totalorder %v155, 1
    %vm175 = vcmp.lt.s32.totalorder %v155, 2
    %vm176 = vcmp.lt.s32.totalorder %v155, 3
    %vm177 = vcmp.lt.s32.totalorder %v155, 4
    %v178 = vsel %vm174, %v158, %v161
    %v179 = vsel %vm177, %v167, 2102212464
    %v180 = vsel %vm176, %v164, %v179
    %v181 = vsel %vm175, %v178, %v180
    %v182 = vsel %vm174, %v161, %v164
    %v183 = vsel %vm177, %v170, 920167782
    %v184 = vsel %vm176, %v167, %v183
    %v185 = vsel %vm175, %v182, %v184
    %v186 = vsel %vm174, %v164, %v167
    %v187 = vsel %vm177, %v173, 1326507024
    %v188 = vsel %vm176, %v170, %v187
    %v189 = vsel %vm175, %v186, %v188
    %v190 = vshll.u32 %v150, 8
    %v191 = vmul.u32.u64.compose %v190, %v189
    %v192 = vextract.low.u32 %v191
    %v193 = vextract.high.u32 %v191
    %v194 = vmul.u32.u64.compose %v190, %v185
    %v195 = vextract.low.u32 %v194
    %v196 = vextract.high.u32 %v194
    %v197 = vmul.u32 %v190, %v181
    %v198 = vadd.s32 %v193, %v195
    %vm199 = vc.u32 %v193, %v195
    %v200 = vadd.s32 %v196, 1
    %v201 = vsel %vm199, %v200, %v196
    %v202 = vadd.s32 %v197, %v201
    %v203 = vadd.s32 %v202, 536870912
    %v204 = vshrl.u32 %v203, 30
    %v205 = vshll.u32 %v204, 30
    %v206 = vsub.s32 %v202, %v205
    %vm207 = vcmp.lt.s32.totalorder %v206, 0
    %v208 = vsub.s32 0, %v206
    %v209 = vsel %vm207, %v208, %v206
    %v210 = vclz %v209
    %v211 = vsub.s32 %v210, 2
    %vm212 = vcmp.gt.s32.totalorder 0, %v211
    %v213 = vsel %vm212, 0, %v211
    %v214 = vsub.s32 32, %v213
    %v215 = vshll.u32 %v206, %v213
    %v216 = vshrl.u32 %v198, %v214
    %v217 = vor.u32 %v215, %v216
    %v218 = vsub.s32 4294967266, %v213
    %v219 = vadd.s32 %v218, 127
    %v220 = vshll.u32 %v219, 23
    %v221 = vor.u32 4788187, %v220
    %v222 = vand.u32 2147483647, %v221
    %v224 = vcvt.s32.f32 %v217
    %v225 = vmul.f32 %v224, %v222
    %v226 = vxor.u32 %v225, 2147483648
    %v227 = vsel %vm144, %v226, %v225
    %v228 = vsub.s32 4, %v204
    %v229 = vsel %vm144, %v228, %v204
    %v230 = vsel %vm143, %v34, %v227
    %v231 = vsel %vm143, 0, %v229
    %v232 = vcosq.f32.pop %v230
    %v233 = vsinq.f32.pop %v230
    %vm234 = vweird.f32 %v34
    %v235 = vadd.s32 %v231, 3
    %v236 = vand.u32 %v235, 3
    %vm237 = vcmp.lt.s32.totalorder %v236, 2
    %vm238 = vcmp.eq.s32.totalorder %v236, 0
    %v239 = vxor.u32 %v233, 2147483648
    %v240 = vsel %vm238, %v232, %v239
    %vm241 = vcmp.eq.s32.totalorder %v236, 2
    %v242 = vxor.u32 %v232, 2147483648
    %v243 = vsel %vm241, %v242, %v233
    %v244 = vsel %vm237, %v240, %v243
    %v245 = vsel %vm234, nan, %v244
    %v246 = vand.u32 2147483647, %v33
    %vm247 = vcmp.le.f32.partialorder %v246, 0.7853982
    %vm248 = vcmp.lt.s32.totalorder %v33, 0
    %v249 = vand.u32 %v33, 2139095040
    %v250 = vshrl.u32 %v249, 23
    %v251 = vsub.s32 %v250, 127
    %v252 = vand.u32 2147483647, %v33
    %v253 = vand.u32 %v252, 8388607
    %v254 = vor.u32 %v253, 8388608
    %v255 = vsub.s32 0, %v254
    %v256 = vadd.s32 %v251, 1
    %vm257 = vcmp.gt.s32.totalorder %v256, 0
    %v258 = vsel %vm257, %v256, 0
    %v259 = vshrl.u32 %v258, 5
    %v260 = vand.u32 %v258, 31
    %v261 = vsub.s32 32, %v260
    %v262 = vshrl.u32 683565275, %v261
    %v263 = vshll.u32 683565275, %v260
    %v264 = vshrl.u32 2475754826, %v261
    %v265 = vor.u32 %v263, %v264
    %v266 = vshll.u32 2475754826, %v260
    %v267 = vshrl.u32 2131351028, %v261
    %v268 = vor.u32 %v266, %v267
    %v269 = vshll.u32 2131351028, %v260
    %v270 = vshrl.u32 2102212464, %v261
    %v271 = vor.u32 %v269, %v270
    %v272 = vshll.u32 2102212464, %v260
    %v273 = vshrl.u32 920167782, %v261
    %v274 = vor.u32 %v272, %v273
    %v275 = vshll.u32 920167782, %v260
    %v276 = vshrl.u32 1326507024, %v261
    %v277 = vor.u32 %v275, %v276
    %vm278 = vcmp.lt.s32.totalorder %v259, 1
    %vm279 = vcmp.lt.s32.totalorder %v259, 2
    %vm280 = vcmp.lt.s32.totalorder %v259, 3
    %vm281 = vcmp.lt.s32.totalorder %v259, 4
    %v282 = vsel %vm278, %v262, %v265
    %v283 = vsel %vm281, %v271, 2102212464
    %v284 = vsel %vm280, %v268, %v283
    %v285 = vsel %vm279, %v282, %v284
    %v286 = vsel %vm278, %v265, %v268
    %v287 = vsel %vm281, %v274, 920167782
    %v288 = vsel %vm280, %v271, %v287
    %v289 = vsel %vm279, %v286, %v288
    %v290 = vsel %vm278, %v268, %v271
    %v291 = vsel %vm281, %v277, 1326507024
    %v292 = vsel %vm280, %v274, %v291
    %v293 = vsel %vm279, %v290, %v292
    %v294 = vshll.u32 %v254, 8
    %v295 = vmul.u32.u64.compose %v294, %v293
    %v296 = vextract.low.u32 %v295
    %v297 = vextract.high.u32 %v295
    %v298 = vmul.u32.u64.compose %v294, %v289
    %v299 = vextract.low.u32 %v298
    %v300 = vextract.high.u32 %v298
    %v301 = vmul.u32 %v294, %v285
    %v302 = vadd.s32 %v297, %v299
    %vm303 = vc.u32 %v297, %v299
    %v304 = vadd.s32 %v300, 1
    %v305 = vsel %vm303, %v304, %v300
    %v306 = vadd.s32 %v301, %v305
    %v307 = vadd.s32 %v306, 536870912
    %v308 = vshrl.u32 %v307, 30
    %v309 = vshll.u32 %v308, 30
    %v310 = vsub.s32 %v306, %v309
    %vm311 = vcmp.lt.s32.totalorder %v310, 0
    %v312 = vsub.s32 0, %v310
    %v313 = vsel %vm311, %v312, %v310
    %v314 = vclz %v313
    %v315 = vsub.s32 %v314, 2
    %vm316 = vcmp.gt.s32.totalorder 0, %v315
    %v317 = vsel %vm316, 0, %v315
    %v318 = vsub.s32 32, %v317
    %v319 = vshll.u32 %v310, %v317
    %v320 = vshrl.u32 %v302, %v318
    %v321 = vor.u32 %v319, %v320
    %v322 = vsub.s32 4294967266, %v317
    %v323 = vadd.s32 %v322, 127
    %v324 = vshll.u32 %v323, 23
    %v325 = vor.u32 4788187, %v324
    %v326 = vand.u32 2147483647, %v325
    %v328 = vcvt.s32.f32 %v321
    %v329 = vmul.f32 %v328, %v326
    %v330 = vxor.u32 %v329, 2147483648
    %v331 = vsel %vm248, %v330, %v329
    %v332 = vsub.s32 4, %v308
    %v333 = vsel %vm248, %v332, %v308
    %v334 = vsel %vm247, %v33, %v331
    %v335 = vsel %vm247, 0, %v333
    %v336 = vcosq.f32.pop %v334
    %v337 = vsinq.f32.pop %v334
    %vm338 = vweird.f32 %v33
    %v339 = vand.u32 %v335, 3
    %vm340 = vcmp.lt.s32.totalorder %v339, 2
    %vm341 = vcmp.eq.s32.totalorder %v339, 0
    %v342 = vxor.u32 %v337, 2147483648
    %v343 = vsel %vm341, %v336, %v342
    %vm344 = vcmp.eq.s32.totalorder %v339, 2
    %v345 = vxor.u32 %v336, 2147483648
    %v346 = vsel %vm344, %v345, %v337
    %v347 = vsel %vm340, %v343, %v346
    %v348 = vsel %vm338, nan, %v347
    %v349 = vand.u32 2147483647, %v34
    %vm350 = vcmp.le.f32.partialorder %v349, 0.7853982
    %vm351 = vcmp.lt.s32.totalorder %v34, 0
    %v352 = vand.u32 %v34, 2139095040
    %v353 = vshrl.u32 %v352, 23
    %v354 = vsub.s32 %v353, 127
    %v355 = vand.u32 2147483647, %v34
    %v356 = vand.u32 %v355, 8388607
    %v357 = vor.u32 %v356, 8388608
    %v358 = vsub.s32 0, %v357
    %v359 = vadd.s32 %v354, 1
    %vm360 = vcmp.gt.s32.totalorder %v359, 0
    %v361 = vsel %vm360, %v359, 0
    %v362 = vshrl.u32 %v361, 5
    %v363 = vand.u32 %v361, 31
    %v364 = vsub.s32 32, %v363
    %v365 = vshrl.u32 683565275, %v364
    %v366 = vshll.u32 683565275, %v363
    %v367 = vshrl.u32 2475754826, %v364
    %v368 = vor.u32 %v366, %v367
    %v369 = vshll.u32 2475754826, %v363
    %v370 = vshrl.u32 2131351028, %v364
    %v371 = vor.u32 %v369, %v370
    %v372 = vshll.u32 2131351028, %v363
    %v373 = vshrl.u32 2102212464, %v364
    %v374 = vor.u32 %v372, %v373
    %v375 = vshll.u32 2102212464, %v363
    %v376 = vshrl.u32 920167782, %v364
    %v377 = vor.u32 %v375, %v376
    %v378 = vshll.u32 920167782, %v363
    %v379 = vshrl.u32 1326507024, %v364
    %v380 = vor.u32 %v378, %v379
    %vm381 = vcmp.lt.s32.totalorder %v362, 1
    %vm382 = vcmp.lt.s32.totalorder %v362, 2
    %vm383 = vcmp.lt.s32.totalorder %v362, 3
    %vm384 = vcmp.lt.s32.totalorder %v362, 4
    %v385 = vsel %vm381, %v365, %v368
    %v386 = vsel %vm384, %v374, 2102212464
    %v387 = vsel %vm383, %v371, %v386
    %v388 = vsel %vm382, %v385, %v387
    %v389 = vsel %vm381, %v368, %v371
    %v390 = vsel %vm384, %v377, 920167782
    %v391 = vsel %vm383, %v374, %v390
    %v392 = vsel %vm382, %v389, %v391
    %v393 = vsel %vm381, %v371, %v374
    %v394 = vsel %vm384, %v380, 1326507024
    %v395 = vsel %vm383, %v377, %v394
    %v396 = vsel %vm382, %v393, %v395
    %v397 = vshll.u32 %v357, 8
    %v398 = vmul.u32.u64.compose %v397, %v396
    %v399 = vextract.low.u32 %v398
    %v400 = vextract.high.u32 %v398
    %v401 = vmul.u32.u64.compose %v397, %v392
    %v402 = vextract.low.u32 %v401
    %v403 = vextract.high.u32 %v401
    %v404 = vmul.u32 %v397, %v388
    %v405 = vadd.s32 %v400, %v402
    %vm406 = vc.u32 %v400, %v402
    %v407 = vadd.s32 %v403, 1
    %v408 = vsel %vm406, %v407, %v403
    %v409 = vadd.s32 %v404, %v408
    %v410 = vadd.s32 %v409, 536870912
    %v411 = vshrl.u32 %v410, 30
    %v412 = vshll.u32 %v411, 30
    %v413 = vsub.s32 %v409, %v412
    %vm414 = vcmp.lt.s32.totalorder %v413, 0
    %v415 = vsub.s32 0, %v413
    %v416 = vsel %vm414, %v415, %v413
    %v417 = vclz %v416
    %v418 = vsub.s32 %v417, 2
    %vm419 = vcmp.gt.s32.totalorder 0, %v418
    %v420 = vsel %vm419, 0, %v418
    %v421 = vsub.s32 32, %v420
    %v422 = vshll.u32 %v413, %v420
    %v423 = vshrl.u32 %v405, %v421
    %v424 = vor.u32 %v422, %v423
    %v425 = vsub.s32 4294967266, %v420
    %v426 = vadd.s32 %v425, 127
    %v427 = vshll.u32 %v426, 23
    %v428 = vor.u32 4788187, %v427
    %v429 = vand.u32 2147483647, %v428
    %v431 = vcvt.s32.f32 %v424
    %v432 = vmul.f32 %v431, %v429
    %v433 = vxor.u32 %v432, 2147483648
    %v434 = vsel %vm351, %v433, %v432
    %v435 = vsub.s32 4, %v411
    %v436 = vsel %vm351, %v435, %v411
    %v437 = vsel %vm350, %v34, %v434
    %v438 = vsel %vm350, 0, %v436
    %v439 = vcosq.f32.pop %v437
    %v440 = vsinq.f32.pop %v437
    %vm441 = vweird.f32 %v34
    %v442 = vand.u32 %v438, 3
    %vm443 = vcmp.lt.s32.totalorder %v442, 2
    %vm444 = vcmp.eq.s32.totalorder %v442, 0
    %v445 = vxor.u32 %v440, 2147483648
    %v446 = vsel %vm444, %v439, %v445
    %vm447 = vcmp.eq.s32.totalorder %v442, 2
    %v448 = vxor.u32 %v439, 2147483648
    %v449 = vsel %vm447, %v448, %v440
    %v450 = vsel %vm443, %v446, %v449
    %v451 = vsel %vm441, nan, %v450
    %v452 = vsel %vm37, %v141, %v348
    %v453 = vsel %vm37, %v245, %v451
    %vm454 = vcmp.ne.s32.totalorder %v12, 0
    %vm455 = vcmp.ne.s32.totalorder %v13, 0
    %v456 = vsel %vm454, 1, 0
    %v457 = vsel %vm455, 1, 0
    %458 = vset.pattern.permute.xlu0 0
    %459 = vperm.xlu0 %458, %v456
    %v460 = vpop.permute.xlu0 %459
    %461 = vset.pattern.permute.xlu0 0
    %462 = vperm.xlu0 %461, %v457
    %v463 = vpop.permute.xlu0 %462
    %vm464 = vcmp.eq.s32.totalorder %v460, 1
    %vm465 = vcmp.eq.s32.totalorder %v463, 1
    %v466 = vsel %vm464, %v452, 0.0
    %v467 = vsel %vm465, %v453, 0.0
    %vm468 = vcmask 261120
    %469 = vst.msk [vmem:[#allocation2] sm:$0xff] %vm468, %v466
    %470 = vst.msk [vmem:[#allocation2 + $0x8] sm:$0xff] %vm468, %v467
    // Predicated region
    $region10: #{tpu_custom_call.1} parent=1 // pred_check
      _
    $region11: #{tpu_custom_call.1} parent=1 // pred_check_branch
      %472 = sbr.rel (0) target = $region13
    $region12: #{tpu_custom_call.1} parent=1 // pred_region
      %s474 = ssub.s32 256, 256
      %475 = vsyncadd [#allocation3], %s474
      %s476 = sshll.u32 [#allocation2], 4
      %s477 = int_to_ptr.vmem [resolvable:$true] %s476
      %482 = dma.vmem_to_hbm [thread:$0]  %s477, 256, %s2, [#allocation3], 128, 128, 8
    $region13: #{tpu_custom_call.1} parent=1 // pred_fallthru
      _
    // Predicated region
    $region14: #{tpu_custom_call.1} parent=1 // pred_check
      _
    $region15: #{tpu_custom_call.1} parent=1 // pred_check_branch
      %484 = sbr.rel (0) target = $region17
    $region16: #{tpu_custom_call.1} parent=1 // pred_region
      %485 = dma.done [#allocation3], 256
    $region17: #{tpu_custom_call.1} parent=1 // pred_fallthru
      _
    %486 = vsyncpa [#allocation3], 1

</llo_original>
